<compile_context>
chip_gen: v6e
topology: v6e:2x2x1
jax: 0.10.0
libtpu: 0.0.40
codegen_flags: <defaults>
</compile_context>

<pallas_src>
import functools

import jax
import jax.numpy as jnp
from jax.experimental import pallas as pl
from jax.experimental.pallas import tpu as pltpu


def _round_up(x, m):
    return ((x + m - 1) // m) * m


def _padded_tile_bytes(rows, cols, dtype):
    """VMEM bytes actually occupied by a (rows, cols) tile of `dtype`.

    Sublanes pack 32 bits (8 rows for f32, 16 for bf16/f16); lanes pad to 128.
    """
    itemsize = jnp.dtype(dtype).itemsize
    sublane = max(8, 32 // itemsize)
    return _round_up(rows, sublane) * _round_up(cols, 128) * itemsize


def _gaussian_kernel(dist_ref, offset_ref, out_ref, *, coeff, exp_dtype):
    # dist_ref: (TM, 1), offset_ref: (1, G) f32, out_ref: (TM, G)
    d = dist_ref[...].astype(jnp.float32) - offset_ref[...]      # (TM, G) f32
    arg = (coeff * d) * d                                         # 3 VPU ops/elem
    # Optional bf16 exp argument (v6e/v7x bf16 EUP); default keeps f32 exp.
    out_ref[...] = jnp.exp(arg.astype(exp_dtype)).astype(out_ref.dtype)


def gaussian_smearing(dist, *, start=0.0, stop=5.0, num_gaussians=50,
                      tm=8192, min_grid_steps=4,
                      out_dtype=jnp.float32, exp_dtype=jnp.float32):
    """Pallas equivalent of GaussianSmearing.forward.

    dist: any-shaped float array. Returns (dist.size, num_gaussians) array.

    out_dtype=jnp.bfloat16 halves HBM write traffic (~2x on v5e/v6e) at ~0.4%
    relative error; exp_dtype=jnp.bfloat16 additionally doubles EUP throughput
    on v6e/v7x (do not use on v5e). Both are opt-in; f32 is the validated path.
    """
    if num_gaussians < 2:
        raise ValueError("num_gaussians must be >= 2 (spacing would be undefined)")
    if stop <= 0.0:
        # Mirrors the torch module, which computes exp(log(stop)).
        raise ValueError("stop must be > 0")
    if min_grid_steps < 1:
        raise ValueError("min_grid_steps must be >= 1")

    # Compile-time Python scalars -> jit-safe, no traced-array concretization.
    spacing = (stop - start) / (num_gaussians - 1)
    coeff = -0.5 / spacing ** 2

    offset_row = jnp.linspace(start, stop, num_gaussians,
                              dtype=jnp.float32).reshape(1, num_gaussians)

    dist_flat = jnp.reshape(dist, (-1, 1))
    if (not jnp.issubdtype(dist_flat.dtype, jnp.floating)
            or jnp.dtype(dist_flat.dtype).itemsize > 4):
        # int / f64 callers: normalize once here (rare path); <=32-bit float
        # inputs are upcast for free inside the kernel (no extra HBM copy).
        dist_flat = dist_flat.astype(jnp.float32)
    n = dist_flat.shape[0]
    out_dtype = jnp.dtype(out_dtype)

    if n == 0:
        return jnp.zeros((0, num_gaussians), dtype=out_dtype)

    # --- Row-tile sizing ------------------------------------------------------
    # Big tiles amortize the ~0.35 us/grid-step overhead, but keep at least
    # `min_grid_steps` grid steps so both v7x TensorCores get work and the DMA
    # pipeline double-buffers. Rows stay a multiple of the sublane packing of
    # the narrowest dtype involved so the BlockSpec tiling constraint holds.
    row_mult = max(8, 32 // min(jnp.dtype(dist_flat.dtype).itemsize,
                                out_dtype.itemsize))
    tm_cap = max(row_mult, _round_up(min(tm, n), row_mult))
    tm_balanced = max(row_mult, _round_up(pl.cdiv(n, min_grid_steps), row_mult))
    tm_eff = min(tm_cap, tm_balanced)
    grid = (pl.cdiv(n, tm_eff),)

    # --- VMEM budget (double-buffered, padded tiles) ---------------------------
    # The (tm_eff, 1) dist tile lane-pads to 128 wide in VMEM, so it costs as
    # much as the output tile; budget for it explicitly so the bigger tiles
    # keep full pipelining on v5e's 16 MiB scoped default.
    per_buffer = (_padded_tile_bytes(tm_eff, 1, dist_flat.dtype)
                  + _padded_tile_bytes(tm_eff, num_gaussians, out_dtype)
                  + _padded_tile_bytes(1, num_gaussians, jnp.float32))
    vmem_limit = max(2 * per_buffer + (4 << 20), 32 << 20)   # headroom + floor

    kernel = functools.partial(_gaussian_kernel, coeff=coeff,
                               exp_dtype=jnp.dtype(exp_dtype))

    cost = pl.CostEstimate(
        flops=3 * n * num_gaussians,
        transcendentals=n * num_gaussians,
        bytes_accessed=(n * jnp.dtype(dist_flat.dtype).itemsize
                        + num_gaussians * 4
                        + n * num_gaussians * out_dtype.itemsize))

    return pl.pallas_call(
        kernel,
        out_shape=jax.ShapeDtypeStruct((n, num_gaussians), out_dtype),
        grid=grid,
        in_specs=[
            pl.BlockSpec((tm_eff, 1), lambda i: (i, 0)),             # dist tile
            pl.BlockSpec((1, num_gaussians), lambda i: (0, 0)),      # all offsets
        ],
        out_specs=pl.BlockSpec((tm_eff, num_gaussians), lambda i: (i, 0)),
        compiler_params=pltpu.CompilerParams(
            dimension_semantics=("parallel",),
            vmem_limit_bytes=int(vmem_limit)),
        cost_estimate=cost,
    )(dist_flat, offset_row)


def gaussian_smearing_ref(dist, *, start=0.0, stop=5.0, num_gaussians=50):
    spacing = (stop - start) / (num_gaussians - 1)
    coeff = -0.5 / spacing ** 2
    offset = jnp.linspace(start, stop, num_gaussians, dtype=jnp.float32)
    d = jnp.reshape(dist, (-1, 1)).astype(jnp.float32) - offset.reshape(1, -1)
    return jnp.exp(coeff * d * d)


if __name__ == "__main__":
    key = jax.random.PRNGKey(0)
    # 200 pairwise distances in [0, 5) — intentionally not tile-aligned so the
    # clipped partial last block and the min_grid_steps path are exercised.
    dist = jax.random.uniform(key, (200,), dtype=jnp.float32,
                              minval=0.0, maxval=5.0)

    # Validated default path: f32 output, f32 exp.
    out = jax.block_until_ready(gaussian_smearing(dist))
    ref = gaussian_smearing_ref(dist)
    assert out.shape == (200, 50), out.shape
    assert out.dtype == jnp.float32, out.dtype
    assert jnp.allclose(out, ref, atol=1e-5, rtol=1e-5), \
        float(jnp.max(jnp.abs(out - ref)))

    # Opt-in bf16 output (halves HBM write traffic); compute stays f32.
    out_bf16 = jax.block_until_ready(
        gaussian_smearing(dist, out_dtype=jnp.bfloat16))
    assert out_bf16.shape == (200, 50) and out_bf16.dtype == jnp.bfloat16
    assert jnp.allclose(out_bf16.astype(jnp.float32), ref, atol=1e-2, rtol=2e-2)

    print("KERNEL_OK")
</pallas_src>

<mosaic_0001>
module attributes {stable_mosaic.version = 11 : i64} {
  func.func @_gaussian_kernel(%arg0: i32, %arg1: memref<56x1xf32, #tpu.memory_space<vmem>>, %arg2: memref<1x50xf32, #tpu.memory_space<vmem>>, %arg3: memref<56x50xf32, #tpu.memory_space<vmem>>) attributes {dimension_semantics = [#tpu.dimension_semantics<parallel>], iteration_bounds = array<i64: 4>, scalar_prefetch = 0 : i64, scratch_operands = 0 : i64, tpu.core_type = #tpu.core_type<tc>, window_params = [{transform_indices = @transform_0, window_bounds = array<i64: 56, 1>}, {pipeline_mode = #tpu.pipeline_mode<synchronous>, transform_indices = @transform_1, window_bounds = array<i64: 1, 50>}, {transform_indices = @transform_2, window_bounds = array<i64: 56, 50>}]} {
    %c0 = arith.constant 0 : index
    %c0_0 = arith.constant 0 : index
    %0 = vector.load %arg1[%c0, %c0_0] : memref<56x1xf32, #tpu.memory_space<vmem>>, vector<56x1xf32>
    %c0_1 = arith.constant 0 : index
    %c0_2 = arith.constant 0 : index
    %1 = vector.load %arg2[%c0_1, %c0_2] : memref<1x50xf32, #tpu.memory_space<vmem>>, vector<1x50xf32>
    %2 = vector.broadcast %0 : vector<56x1xf32> to vector<56x50xf32>
    %3 = vector.broadcast %1 : vector<1x50xf32> to vector<56x50xf32>
    %4 = arith.subf %2, %3 : vector<56x50xf32>
    %cst = arith.constant -4.802000e+01 : f32
    %5 = vector.broadcast %cst : f32 to vector<56x50xf32>
    %6 = arith.mulf %5, %4 : vector<56x50xf32>
    %7 = arith.mulf %6, %4 : vector<56x50xf32>
    %8 = math.exp %7 : vector<56x50xf32>
    %c0_3 = arith.constant 0 : index
    %c0_4 = arith.constant 0 : index
    %9 = vector.load %arg3[%c0_3, %c0_4] : memref<56x50xf32, #tpu.memory_space<vmem>>, vector<56x50xf32>
    tpu.vector_store %arg3[%c0_3, %c0_4], %8 {strides = array<i32>} : memref<56x50xf32, #tpu.memory_space<vmem>>, vector<56x50xf32>,
    return
  }
  func.func @transform_0(%arg0: i32) -> (i32, i32) {
    %c0_i32 = arith.constant 0 : i32
    %c0_i32_0 = arith.constant 0 : i32
    return %arg0, %c0_i32 : i32, i32
  }
  func.func @transform_1(%arg0: i32) -> (i32, i32) {
    %c0_i32 = arith.constant 0 : i32
    %c0_i32_0 = arith.constant 0 : i32
    %c0_i32_1 = arith.constant 0 : i32
    return %c0_i32, %c0_i32_0 : i32, i32
  }
  func.func @transform_2(%arg0: i32) -> (i32, i32) {
    %c0_i32 = arith.constant 0 : i32
    %c0_i32_0 = arith.constant 0 : i32
    return %arg0, %c0_i32 : i32, i32
  }
}

</mosaic_0001>

<llo_original>
// kernel: tpu_custom_call.1
$region0: #{tpu_custom_call.1}
  #allocation0 [shape = 'u32[]', space=smem, size = 0x4, offset = 0x4, fixed_abs, tag = 'smem constant byte address 0x4 - core index']
  #allocation1 [shape = 'u32[144,128]{1,0:T(1,128)}', space=vmem, size = 0x12000, scoped, tag = 'internal scratch']
  %s0 = inlined_call_operand.vmem [shape: f32[200,1], index: 0, kind: input, shape index: {}]
  %s1 = inlined_call_operand.vmem [shape: f32[1,50], index: 1, kind: input, shape index: {}]
  %s2 = inlined_call_operand.vmem [shape: f32[200,50], index: 2, kind: output, shape index: {}]
  %s3 = sld [smem:[#allocation0]]
  $region89: #{tpu_custom_call.1} parent=0
    _
  %s5 = ssub.s32 1, %s3
  %s6 = scalar_select 0, %s5, %s3
  $region1: #{tpu_custom_call.1} parent=0
    #allocation2 [shape = 'u8[57344]{0}', space=vmem, size = 0xe000, scoped, tag = 'output window, operand 0']
    loop: start=0, step=1, limit=6
    $region2: #{tpu_custom_call.1} parent=1 // loop_pre_header
      _
    $region3: #{tpu_custom_call.1} parent=1 // loop_header
      %s8 = sphi 0, %s12
      %p9 = scmp.ge.s32.totalorder %s8, 6
      %s18 = sphi 0, %s20
      %s21 = sphi 0, %s18
      %s22 = sphi 0, %s21
      %s38 = sphi 0, %s22
      %s42 = sphi 0, %s42
      %s44 = sphi 0, %s42
      %s45 = sphi 0, %s44
      %s59 = sphi 0, %s45
      %s65 = sphi 0, %s67
      %s68 = sphi 0, %s65
      %s69 = sphi 0, %s68
      %s85 = sphi 0, %s69
    $region4: #{tpu_custom_call.1} parent=1 // loop_header_branch
      %11 = sbr.rel (%p9) target = $region8
    $region5: #{tpu_custom_call.1} parent=1 // loop_body
      %s13 = ssub.s32 %s8, 1
      %s14 = ssub.s32 %s8, 2
      %s15 = sadd.s32 %s8, 1
      %s16 = ssub.s32 %s8, %s15
      %p17 = scmp.eq.s32.totalorder %s16, 0
      %s19 = sadd.s32 %s18, 1
      %s20 = scalar_select %p17, %s18, %s19
      %p23 = pneg %p17
      %p24 = scmp.eq.s32.totalorder %s8, 3
      %p25 = por %p23, %p24
      %p26 = scmp.ne.s32.totalorder %s18, %s21
      %p27 = scmp.eq.s32.totalorder %s8, 0
      %p28 = por %p26, %p27
      %p29 = scmp.ne.s32.totalorder %s18, %s21
      %p30 = scmp.eq.s32.totalorder %s13, 3
      %p31 = por %p29, %p30
      %p32 = scmp.ne.s32.totalorder %s21, %s22
      %p33 = scmp.eq.s32.totalorder %s13, 0
      %p34 = por %p32, %p33
      %p35 = scmp.ne.s32.totalorder %s21, %s22
      %p36 = scmp.eq.s32.totalorder %s14, 3
      %p37 = por %p35, %p36
      %p39 = scmp.ne.s32.totalorder %s22, %s38
      %p40 = scmp.eq.s32.totalorder %s14, 0
      %p41 = por %p39, %p40
      %s43 = sadd.s32 %s42, 1
      %p46 = scmp.eq.s32.totalorder %s8, 3
      %p47 = scmp.ne.s32.totalorder %s42, %s44
      %p48 = scmp.eq.s32.totalorder %s8, 0
      %p49 = por %p47, %p48
      %p50 = scmp.ne.s32.totalorder %s42, %s44
      %p51 = scmp.eq.s32.totalorder %s13, 3
      %p52 = por %p50, %p51
      %p53 = scmp.ne.s32.totalorder %s44, %s45
      %p54 = scmp.eq.s32.totalorder %s13, 0
      %p55 = por %p53, %p54
      %p56 = scmp.ne.s32.totalorder %s44, %s45
      %p57 = scmp.eq.s32.totalorder %s14, 3
      %p58 = por %p56, %p57
      %p60 = scmp.ne.s32.totalorder %s45, %s59
      %p61 = scmp.eq.s32.totalorder %s14, 0
      %p62 = por %p60, %p61
      %s63 = ssub.s32 %s8, %s15
      %p64 = scmp.eq.s32.totalorder %s63, 0
      %s66 = sadd.s32 %s65, 1
      %s67 = scalar_select %p64, %s65, %s66
      %p70 = pneg %p64
      %p71 = scmp.eq.s32.totalorder %s8, 3
      %p72 = por %p70, %p71
      %p73 = scmp.ne.s32.totalorder %s65, %s68
      %p74 = scmp.eq.s32.totalorder %s8, 0
      %p75 = por %p73, %p74
      %p76 = scmp.ne.s32.totalorder %s65, %s68
      %p77 = scmp.eq.s32.totalorder %s13, 3
      %p78 = por %p76, %p77
      %p79 = scmp.ne.s32.totalorder %s68, %s69
      %p80 = scmp.eq.s32.totalorder %s13, 0
      %p81 = por %p79, %p80
      %p82 = scmp.ne.s32.totalorder %s68, %s69
      %p83 = scmp.eq.s32.totalorder %s14, 3
      %p84 = por %p82, %p83
      %p86 = scmp.ne.s32.totalorder %s69, %s85
      %p87 = scmp.eq.s32.totalorder %s14, 0
      %p88 = por %p86, %p87
      %p89 = scmp.le.s32.totalorder 1, %s8
      %p90 = scmp.lt.s32.totalorder %s8, 5
      %p91 = pnand %p89, %p90
      %p92 = pneg %p91
      // Predicated region
      $region9: #{tpu_custom_call.1} parent=5 // pred_check
        _
      $region10: #{tpu_custom_call.1} parent=5 // pred_check_branch
        %94 = sbr.rel (%p91) target = $region12
      $region11: #{tpu_custom_call.1} parent=5 // pred_region
        %s95 = ssub.s32 %s8, 1
        // Predicated region
        $region13: #{tpu_custom_call.1} parent=11 // pred_check
          %p96 = pneg %p55
        $region14: #{tpu_custom_call.1} parent=11 // pred_check_branch
          %98 = sbr.rel (%p96) target = $region16
        $region15: #{tpu_custom_call.1} parent=11 // pred_region
          _
        $region16: #{tpu_custom_call.1} parent=11 // pred_fallthru
          _
      $region12: #{tpu_custom_call.1} parent=5 // pred_fallthru
        _
      %p99 = scmp.lt.s32.totalorder %s8, 4
      // Predicated region
      $region17: #{tpu_custom_call.1} parent=5 // pred_check
        %p100 = pneg %p99
      $region18: #{tpu_custom_call.1} parent=5 // pred_check_branch
        %102 = sbr.rel (%p100) target = $region20
      $region19: #{tpu_custom_call.1} parent=5 // pred_region
        // Predicated region
        $region21: #{tpu_custom_call.1} parent=19 // pred_check
          %p103 = pneg %p28
        $region22: #{tpu_custom_call.1} parent=19 // pred_check_branch
          %105 = sbr.rel (%p103) target = $region24
        $region23: #{tpu_custom_call.1} parent=19 // pred_region
          %s106 = smul.u32 7, %s8
          %s107 = ssub.s32 25, %s106
          %p108 = scmp.lt.s32.totalorder %s107, 7
          %s109 = scalar_select %p108, %s107, 7
          %s110 = smul.u32 128, %s109
          %p111 = scmp.lt.s32.totalorder %s106, 24
          %s112 = scalar_select %p111, %s106, 24
          %s113 = smul.addr %s112, 8
          %s114 = scalar_lea.vmem %s0, %s113
          %s115 = smul.u32 7, %s8
          %s116 = ssub.s32 25, %s115
          %p117 = scmp.lt.s32.totalorder %s116, 7
          %s118 = scalar_select %p117, %s116, 7
          %s119 = smul.u32 128, %s118
        $region24: #{tpu_custom_call.1} parent=19 // pred_fallthru
          _
      $region20: #{tpu_custom_call.1} parent=5 // pred_fallthru
        _
      %p120 = scmp.le.s32.totalorder 1, %s8
      %p121 = scmp.lt.s32.totalorder %s8, 5
      %p122 = pnand %p120, %p121
      %p123 = pneg %p122
      // Predicated region
      $region25: #{tpu_custom_call.1} parent=5 // pred_check
        _
      $region26: #{tpu_custom_call.1} parent=5 // pred_check_branch
        %125 = sbr.rel (%p122) target = $region28
      $region27: #{tpu_custom_call.1} parent=5 // pred_region
        %s126 = ssub.s32 %s8, 1
        %s127 = smul.u32 7, %s13
        %s128 = ssub.s32 25, %s127
        %p129 = scmp.lt.s32.totalorder %s128, 7
        %s130 = scalar_select %p129, %s128, 7
        %s131 = smul.u32 128, %s130
        %p132 = scmp.lt.s32.totalorder %s127, 24
        %s133 = scalar_select %p132, %s127, 24
        %s134 = smul.addr %s133, 8
        %s135 = scalar_lea.vmem %s0, %s134
        %p136 = pneg %p34
        %p137 = pneg %p31
        %p138 = pneg %p55
        %p139 = pneg %p52
        %p140 = pneg %p81
        %p141 = pneg %p78
        %s142 = sand.u32 %s68, 1
        %s143 = sand.u32 %s68, 1
        %s144 = smul.addr %s143, 56
        %s145 = scalar_lea.vmem [#allocation2], %s144
        %s146 = smul.u32 7, %s13
        %s147 = ssub.s32 25, %s146
        %p148 = scmp.lt.s32.totalorder %s147, 7
        %s149 = scalar_select %p148, %s147, 7
        %s150 = smul.u32 128, %s149
        %p151 = scmp.lt.s32.totalorder %s146, 24
        %s152 = scalar_select %p151, %s146, 24
        %s153 = smul.addr %s152, 8
        %s154 = scalar_lea.vmem %s0, %s153
        %s155 = smul.u32 7, %s13
        %s156 = ssub.s32 25, %s155
        %p157 = scmp.lt.s32.totalorder %s156, 7
        %s158 = scalar_select %p157, %s156, 7
        %s159 = smul.u32 128, %s158
        %s160 = smul.u32 7, %s13
        %s161 = ssub.s32 25, %s160
        %p162 = scmp.lt.s32.totalorder %s161, 7
        %s163 = scalar_select %p162, %s161, 7
        %s164 = smul.u32 128, %s163
        %v165 = vld [vmem:[%s154] sm:$0xff]
        %v166 = vld [vmem:[%s154 + $0x8] sm:$0xff]
        %v167 = vld [vmem:[%s154 + $0x10] sm:$0xff]
        %v168 = vld [vmem:[%s154 + $0x18] sm:$0xff]
        %v169 = vld [vmem:[%s154 + $0x20] sm:$0xff]
        %v170 = vld [vmem:[%s154 + $0x28] sm:$0xff]
        %v171 = vld [vmem:[%s154 + $0x30] sm:$0xff]
        %v172 = vld [vmem:[%s1] sm:$0x1]
        %174 = vset.pattern.permute.xlu0 0
        %175 = vperm.xlu0 %174, %v165
        %v176 = vpop.permute.xlu0 %175
        %179 = vset.pattern.permute.xlu0 0
        %180 = vperm.xlu0 %179, %v166
        %v181 = vpop.permute.xlu0 %180
        %184 = vset.pattern.permute.xlu0 0
        %185 = vperm.xlu0 %184, %v167
        %v186 = vpop.permute.xlu0 %185
        %189 = vset.pattern.permute.xlu0 0
        %190 = vperm.xlu0 %189, %v168
        %v191 = vpop.permute.xlu0 %190
        %194 = vset.pattern.permute.xlu0 0
        %195 = vperm.xlu0 %194, %v169
        %v196 = vpop.permute.xlu0 %195
        %199 = vset.pattern.permute.xlu0 0
        %200 = vperm.xlu0 %199, %v170
        %v201 = vpop.permute.xlu0 %200
        %204 = vset.pattern.permute.xlu0 0
        %205 = vperm.xlu0 %204, %v171
        %v206 = vpop.permute.xlu0 %205
        %v209 = vlaneseq
        %v210 = vshrl.u32 %v209, 7
        %v211 = vsub.s32 0, %v210
        %v212 = vrot.slane %v172, %v211
        %v214 = vsub.f32 %v176, %v212
        %v215 = vsub.f32 %v181, %v212
        %v216 = vsub.f32 %v186, %v212
        %v217 = vsub.f32 %v191, %v212
        %v218 = vsub.f32 %v196, %v212
        %v219 = vsub.f32 %v201, %v212
        %v220 = vsub.f32 %v206, %v212
        %v221 = vmul.f32 %v214, -48.02
        %v222 = vmul.f32 %v215, -48.02
        %v223 = vmul.f32 %v216, -48.02
        %v224 = vmul.f32 %v217, -48.02
        %v225 = vmul.f32 %v218, -48.02
        %v226 = vmul.f32 %v219, -48.02
        %v227 = vmul.f32 %v220, -48.02
        %v228 = vmul.f32 %v221, %v214
        %v229 = vmul.f32 %v222, %v215
        %v230 = vmul.f32 %v223, %v216
        %v231 = vmul.f32 %v224, %v217
        %v232 = vmul.f32 %v225, %v218
        %v233 = vmul.f32 %v226, %v219
        %v234 = vmul.f32 %v227, %v220
        %v235 = vmul.f32 %v228, 1.442695
        %v236 = vpow.pop %v235
        %v237 = vmul.f32 %v229, 1.442695
        %v238 = vpow.pop %v237
        %v239 = vmul.f32 %v230, 1.442695
        %v240 = vpow.pop %v239
        %v241 = vmul.f32 %v231, 1.442695
        %v242 = vpow.pop %v241
        %v243 = vmul.f32 %v232, 1.442695
        %v244 = vpow.pop %v243
        %v245 = vmul.f32 %v233, 1.442695
        %v246 = vpow.pop %v245
        %v247 = vmul.f32 %v234, 1.442695
        %v248 = vpow.pop %v247
        %vm249 = vcmask 408576
        %250 = vst.msk [vmem:[%s145] sm:$0xff] %vm249, %v236
        %251 = vst.msk [vmem:[%s145 + $0x8] sm:$0xff] %vm249, %v238
        %252 = vst.msk [vmem:[%s145 + $0x10] sm:$0xff] %vm249, %v240
        %253 = vst.msk [vmem:[%s145 + $0x18] sm:$0xff] %vm249, %v242
        %254 = vst.msk [vmem:[%s145 + $0x20] sm:$0xff] %vm249, %v244
        %255 = vst.msk [vmem:[%s145 + $0x28] sm:$0xff] %vm249, %v246
        %256 = vst.msk [vmem:[%s145 + $0x30] sm:$0xff] %vm249, %v248
        %s257 = sand.u32 %s68, 1
        %s258 = sand.u32 %s68, 1
        %s259 = smul.addr %s258, 56
        %s260 = scalar_lea.vmem [#allocation2], %s259
        // Predicated region
        $region29: #{tpu_custom_call.1} parent=27 // pred_check
          %p261 = pneg %p78
        $region30: #{tpu_custom_call.1} parent=27 // pred_check_branch
          %263 = sbr.rel (%p261) target = $region32
        $region31: #{tpu_custom_call.1} parent=27 // pred_region
          %s264 = smul.u32 7, %s13
          %s265 = ssub.s32 25, %s264
          %p266 = scmp.lt.s32.totalorder %s265, 7
          %s267 = scalar_select %p266, %s265, 7
          %s268 = smul.u32 128, %s267
          %p269 = scmp.ne.s32.totalorder 0, %s268
          %s270 = smul.addr %s264, 8
          %s271 = scalar_lea.vmem %s2, %s270
          // Predicated region
          $region33: #{tpu_custom_call.1} parent=31 // pred_check
            %p272 = pneg %p269
          $region34: #{tpu_custom_call.1} parent=31 // pred_check_branch
            %274 = sbr.rel (%p272) target = $region36
          $region35: #{tpu_custom_call.1} parent=31 // pred_region
            // Predicated region
            $region37: #{tpu_custom_call.1} parent=35 // pred_check
              _
            $region38: #{tpu_custom_call.1} parent=35 // pred_check_branch
              %276 = sbr.rel (0) target = $region40
            $region39: #{tpu_custom_call.1} parent=35 // pred_region
              // Predicated region
              $region59: #{tpu_custom_call.1} parent=39 // pred_check
                _
              $region60: #{tpu_custom_call.1} parent=39 // pred_check_branch
                %339 = sbr.rel (0) target = $region62
              $region61: #{tpu_custom_call.1} parent=39 // pred_region
                %s340 = sdiv.u32.pop %s267, 7
                %s341 = srem.u32.pop %s267, 7
                // While loop
                $region63: #{tpu_custom_call.1} parent=61 // loop_pre_header
                  _
                $region64: #{tpu_custom_call.1} parent=61 // loop_header
                  %s343 = sphi 0, %s345
                  %p344 = scmp.ge.s32.totalorder %s343, %s340
                  %s348 = sphi 0, %s367
                  %s349 = sphi %s260, %s370
                  %s350 = sphi %s271, %s371
                $region65: #{tpu_custom_call.1} parent=61 // loop_header_branch
                  %347 = sbr.rel (%p344) target = $region69
                $region66: #{tpu_custom_call.1} parent=61 // loop_body
                  %v351 = vld [vmem:[%s349] sm:$0xff]
                  %352 = vst [vmem:[%s350] sm:$0xff] %v351
                  %v353 = vld [vmem:[%s349 + $0x8] sm:$0xff]
                  %354 = vst [vmem:[%s350 + $0x8] sm:$0xff] %v353
                  %v355 = vld [vmem:[%s349 + $0x10] sm:$0xff]
                  %356 = vst [vmem:[%s350 + $0x10] sm:$0xff] %v355
                  %v357 = vld [vmem:[%s349 + $0x18] sm:$0xff]
                  %358 = vst [vmem:[%s350 + $0x18] sm:$0xff] %v357
                  %v359 = vld [vmem:[%s349 + $0x20] sm:$0xff]
                  %360 = vst [vmem:[%s350 + $0x20] sm:$0xff] %v359
                  %v361 = vld [vmem:[%s349 + $0x28] sm:$0xff]
                  %362 = vst [vmem:[%s350 + $0x28] sm:$0xff] %v361
                  %v363 = vld [vmem:[%s349 + $0x30] sm:$0xff]
                  %364 = vst [vmem:[%s350 + $0x30] sm:$0xff] %v363
                  %s365 = sadd.s32 1, %s348
                  %p366 = scmp.ge.s32.totalorder %s365, %s340
                  %s367 = scalar_select %p366, 0, %s365
                  %s368 = smul.u32 %s367, 56
                  %s369 = smul.u32 %s367, 56
                  %s370 = scalar_lea.vmem %s260, %s368 [#allocation2]
                  %s371 = scalar_lea.vmem %s271, %s369
                $region67: #{tpu_custom_call.1} parent=61 // loop_footer
                  %s345 = sadd.s32 %s343, 1
                $region68: #{tpu_custom_call.1} parent=61 // loop_footer_branch
                  %342 = sbr.rel target = $region64
                $region69: #{tpu_custom_call.1} parent=61 // loop_exit
                  _
                %s372 = sdiv.u32.pop %s267, 7
                %s373 = srem.u32.pop %s267, 7
                %s374 = smul.u32 %s372, 7
                %s375 = smul.u32 8, %s374
                %s376 = scalar_lea.vmem %s260, %s375 [#allocation2]
                %s377 = smul.u32 8, %s374
                %s378 = scalar_lea.vmem %s271, %s377
                // While loop
                $region70: #{tpu_custom_call.1} parent=61 // loop_pre_header
                  _
                $region71: #{tpu_custom_call.1} parent=61 // loop_header
                  %s380 = sphi 0, %s382
                  %p381 = scmp.ge.s32.totalorder %s380, %s373
                  %s385 = sphi 0, %s392
                  %s386 = sphi %s376, %s395
                  %s387 = sphi %s378, %s396
                $region72: #{tpu_custom_call.1} parent=61 // loop_header_branch
                  %384 = sbr.rel (%p381) target = $region76
                $region73: #{tpu_custom_call.1} parent=61 // loop_body
                  %v388 = vld [vmem:[%s386] sm:$0xff]
                  %389 = vst [vmem:[%s387] sm:$0xff] %v388
                  %s390 = sadd.s32 1, %s385
                  %p391 = scmp.ge.s32.totalorder %s390, %s373
                  %s392 = scalar_select %p391, 0, %s390
                  %s393 = smul.u32 %s392, 8
                  %s394 = smul.u32 %s392, 8
                  %s395 = scalar_lea.vmem %s376, %s393 [#allocation2]
                  %s396 = scalar_lea.vmem %s378, %s394
                $region74: #{tpu_custom_call.1} parent=61 // loop_footer
                  %s382 = sadd.s32 %s380, 1
                $region75: #{tpu_custom_call.1} parent=61 // loop_footer_branch
                  %379 = sbr.rel target = $region71
                $region76: #{tpu_custom_call.1} parent=61 // loop_exit
                  _
              $region62: #{tpu_custom_call.1} parent=39 // pred_fallthru
                _
              // Predicated region
              $region77: #{tpu_custom_call.1} parent=39 // pred_check
                _
              $region78: #{tpu_custom_call.1} parent=39 // pred_check_branch
                %398 = sbr.rel target = $region80
              $region79: #{tpu_custom_call.1} parent=39 // pred_region
                _
              $region80: #{tpu_custom_call.1} parent=39 // pred_fallthru
                _
            $region40: #{tpu_custom_call.1} parent=35 // pred_fallthru
              _
            // Predicated region
            $region41: #{tpu_custom_call.1} parent=35 // pred_check
              _
            $region42: #{tpu_custom_call.1} parent=35 // pred_check_branch
              %278 = sbr.rel target = $region44
            $region43: #{tpu_custom_call.1} parent=35 // pred_region
              %s280 = ssub.s32 256, 1
              %s281 = sdiv.u32.pop %s267, 7
              %s282 = srem.u32.pop %s267, 7
              // While loop
              $region45: #{tpu_custom_call.1} parent=43 // loop_pre_header
                _
              $region46: #{tpu_custom_call.1} parent=43 // loop_header
                %s284 = sphi 0, %s286
                %p285 = scmp.ge.s32.totalorder %s284, %s281
                %s289 = sphi 0, %s308
                %s290 = sphi %s260, %s311
                %s291 = sphi %s271, %s312
              $region47: #{tpu_custom_call.1} parent=43 // loop_header_branch
                %288 = sbr.rel (%p285) target = $region51
              $region48: #{tpu_custom_call.1} parent=43 // loop_body
                %v292 = vld [vmem:[%s290] sm:%s280]
                %293 = vst [vmem:[%s291] sm:%s280] %v292
                %v294 = vld [vmem:[%s290 + $0x8] sm:%s280]
                %295 = vst [vmem:[%s291 + $0x8] sm:%s280] %v294
                %v296 = vld [vmem:[%s290 + $0x10] sm:%s280]
                %297 = vst [vmem:[%s291 + $0x10] sm:%s280] %v296
                %v298 = vld [vmem:[%s290 + $0x18] sm:%s280]
                %299 = vst [vmem:[%s291 + $0x18] sm:%s280] %v298
                %v300 = vld [vmem:[%s290 + $0x20] sm:%s280]
                %301 = vst [vmem:[%s291 + $0x20] sm:%s280] %v300
                %v302 = vld [vmem:[%s290 + $0x28] sm:%s280]
                %303 = vst [vmem:[%s291 + $0x28] sm:%s280] %v302
                %v304 = vld [vmem:[%s290 + $0x30] sm:%s280]
                %305 = vst [vmem:[%s291 + $0x30] sm:%s280] %v304
                %s306 = sadd.s32 1, %s289
                %p307 = scmp.ge.s32.totalorder %s306, %s281
                %s308 = scalar_select %p307, 0, %s306
                %s309 = smul.u32 %s308, 56
                %s310 = smul.u32 %s308, 56
                %s311 = scalar_lea.vmem %s260, %s309 [#allocation2]
                %s312 = scalar_lea.vmem %s271, %s310
              $region49: #{tpu_custom_call.1} parent=43 // loop_footer
                %s286 = sadd.s32 %s284, 1
              $region50: #{tpu_custom_call.1} parent=43 // loop_footer_branch
                %283 = sbr.rel target = $region46
              $region51: #{tpu_custom_call.1} parent=43 // loop_exit
                _
              %s313 = sdiv.u32.pop %s267, 7
              %s314 = srem.u32.pop %s267, 7
              %s315 = smul.u32 %s313, 7
              %s316 = smul.u32 8, %s315
              %s317 = scalar_lea.vmem %s260, %s316 [#allocation2]
              %s318 = smul.u32 8, %s315
              %s319 = scalar_lea.vmem %s271, %s318
              // While loop
              $region52: #{tpu_custom_call.1} parent=43 // loop_pre_header
                _
              $region53: #{tpu_custom_call.1} parent=43 // loop_header
                %s321 = sphi 0, %s323
                %p322 = scmp.ge.s32.totalorder %s321, %s314
                %s326 = sphi 0, %s333
                %s327 = sphi %s317, %s336
                %s328 = sphi %s319, %s337
              $region54: #{tpu_custom_call.1} parent=43 // loop_header_branch
                %325 = sbr.rel (%p322) target = $region58
              $region55: #{tpu_custom_call.1} parent=43 // loop_body
                %v329 = vld [vmem:[%s327] sm:%s280]
                %330 = vst [vmem:[%s328] sm:%s280] %v329
                %s331 = sadd.s32 1, %s326
                %p332 = scmp.ge.s32.totalorder %s331, %s314
                %s333 = scalar_select %p332, 0, %s331
                %s334 = smul.u32 %s333, 8
                %s335 = smul.u32 %s333, 8
                %s336 = scalar_lea.vmem %s317, %s334 [#allocation2]
                %s337 = scalar_lea.vmem %s319, %s335
              $region56: #{tpu_custom_call.1} parent=43 // loop_footer
                %s323 = sadd.s32 %s321, 1
              $region57: #{tpu_custom_call.1} parent=43 // loop_footer_branch
                %320 = sbr.rel target = $region53
              $region58: #{tpu_custom_call.1} parent=43 // loop_exit
                _
            $region44: #{tpu_custom_call.1} parent=35 // pred_fallthru
              _
          $region36: #{tpu_custom_call.1} parent=31 // pred_fallthru
            _
          %399 = vnop
        $region32: #{tpu_custom_call.1} parent=27 // pred_fallthru
          _
      $region28: #{tpu_custom_call.1} parent=5 // pred_fallthru
        _
      %p400 = scmp.le.s32.totalorder 2, %s8
      // Predicated region
      $region81: #{tpu_custom_call.1} parent=5 // pred_check
        %p401 = pneg %p400
      $region82: #{tpu_custom_call.1} parent=5 // pred_check_branch
        %403 = sbr.rel (%p401) target = $region84
      $region83: #{tpu_custom_call.1} parent=5 // pred_region
        %s404 = ssub.s32 %s8, 2
        // Predicated region
        $region85: #{tpu_custom_call.1} parent=83 // pred_check
          %p405 = pneg %p84
        $region86: #{tpu_custom_call.1} parent=83 // pred_check_branch
          %407 = sbr.rel (%p405) target = $region88
        $region87: #{tpu_custom_call.1} parent=83 // pred_region
          %s408 = sand.u32 %s69, 1
          %s409 = sand.u32 %s69, 1
          %s410 = smul.addr %s409, 56
          %s411 = scalar_lea.vmem [#allocation2], %s410
        $region88: #{tpu_custom_call.1} parent=83 // pred_fallthru
          _
      $region84: #{tpu_custom_call.1} parent=5 // pred_fallthru
        _
    $region6: #{tpu_custom_call.1} parent=1 // loop_footer
      %s12 = sadd.s32 1, %s8
    $region7: #{tpu_custom_call.1} parent=1 // loop_footer_branch
      %7 = sbr.rel target = $region3
    $region8: #{tpu_custom_call.1} parent=1 // loop_exit
      _

</llo_original>
